<compile_context>
chip_gen: v5e
topology: v5e:2x2
jax: 0.10.0
libtpu: 0.0.40
codegen_flags: <defaults>
</compile_context>

<pallas_src>
import numpy as np
import jax
import jax.numpy as jnp
from jax import lax
from jax.experimental import pallas as pl
from jax.experimental.pallas import tpu as pltpu


# --------------------------------------------------------------------------
# Pallas kernel factory.  One grid step == one image, tile (C, H*W):
#   channels on sublanes, flattened spatial on lanes (lane-dense stores).
# --------------------------------------------------------------------------
def _make_kernel(dc, shifts, HW):
    def kernel(x_ref, m_ref, wt_ref, w2b_ref, b2_ref, w3_ref, b3_ref, out_ref):
        # x_ref  : (1, C, HW)   one image, channels-first, spatial flattened
        # m_ref  : (16, HW)     rows 0..8 = tap validity masks (zero padding)
        # wt_ref : (9, c_, dc)  per-tap PConv weights folded through cv2 + BN2 scale
        # w2b_ref: (c_, C-dc)   cv2 weights for untouched channels (BN2-scaled)
        # b2_ref : (c_, 1)      folded BN2 bias
        # w3_ref : (C, c_)      cv3 weights (BN3-scaled)
        # b3_ref : (C, 1)       folded BN3 bias
        xb = x_ref[0]                                   # (C, HW)
        x1 = xb[:dc, :]                                 # (dc, HW)   conv'd slice
        x2 = xb[dc:, :]                                 # (C-dc, HW) untouched slice
        masks = m_ref[...]                              # (16, HW)

        # cv2 (1x1, BN scale folded): contribution of the untouched channels.
        acc = jnp.dot(w2b_ref[...], x2, preferred_element_type=jnp.float32)

        # + 9 shifted taps of the partial 3x3 conv, folded through cv2.
        # Shift = lane roll within the image; wrapped / out-of-image lanes are
        # exactly the zero-padding positions -> killed by the mask.
        for t, s in enumerate(shifts):
            if s == 0:                                  # center tap: no shift, mask == 1
                tap = x1
            else:
                tap = pltpu.roll(x1, (-s) % HW, axis=1) * masks[t:t + 1, :]
            acc = acc + jnp.dot(wt_ref[t], tap, preferred_element_type=jnp.float32)

        z2 = acc + b2_ref[...]                          # BN2 bias (f32)
        y2 = z2 * jax.nn.sigmoid(z2)                    # SiLU (f32, EUP)

        z3 = jnp.dot(w3_ref[...], y2.astype(w3_ref.dtype),
                     preferred_element_type=jnp.float32) + b3_ref[...]
        y3 = z3 * jax.nn.sigmoid(z3)                    # SiLU (f32)

        out_ref[0] = (xb.astype(jnp.float32) + y3).astype(out_ref.dtype)
    return kernel


# --------------------------------------------------------------------------
# One-time weight folding (numpy, NOT in the per-call path).
# --------------------------------------------------------------------------
def grouped_conv_to_dense_taps(w, groups):
    """(out_ch, in_per_group, 3, 3) grouped OIHW weight -> (9, in_ch, out_ch)
    dense per-tap matrices (zeros across groups)."""
    w = np.asarray(w, np.float32)
    out_ch, in_pg, kh, kw = w.shape
    out_pg = out_ch // groups
    in_ch = groups * in_pg
    dense = np.zeros((kh * kw, in_ch, out_ch), np.float32)
    for o in range(out_ch):
        g = o // out_pg
        for j in range(in_pg):
            dense[:, g * in_pg + j, o] = w[o, j].reshape(-1)
    return dense


def _fold_bn_np(bn, eps=1e-5):
    gamma, beta, mean, var = (np.asarray(t, np.float32) for t in bn)
    scale = gamma / np.sqrt(var + eps)
    bias = beta - mean * scale
    return scale, bias


def prepare_params(params, compute_dtype=jnp.float32):
    """Fold PConv taps + BN scales into cv2/cv3 weights.  Returns an array-only
    pytree (safe to pass through jax.jit)."""
    dc, c_, g1 = params['dc'], params['c_'], params['g1']

    dense = grouped_conv_to_dense_taps(params['pconv_w'], g1)        # (9, dc, dc)
    w2 = np.asarray(params['w2'], np.float32)[:, :, 0, 0]            # (c_, C)
    w2a = w2[:, :dc].T                                               # (dc, c_)
    w2b = w2[:, dc:]                                                 # (c_, C-dc)
    wtaps = np.einsum('tio,oc->tci', dense, w2a)                     # (9, c_, dc)

    s2, b2 = _fold_bn_np(params['bn2'])                              # (c_,)
    s3, b3 = _fold_bn_np(params['bn3'])                              # (C,)
    w3 = np.asarray(params['w3'], np.float32)[:, :, 0, 0]            # (C, c_)

    return {
        'wt':  jnp.asarray(wtaps * s2[None, :, None], compute_dtype),   # (9, c_, dc)
        'w2b': jnp.asarray(w2b * s2[:, None], compute_dtype),           # (c_, C-dc)
        'b2':  jnp.asarray(b2[:, None], jnp.float32),                   # (c_, 1)
        'w3':  jnp.asarray(w3 * s3[:, None], compute_dtype),            # (C, c_)
        'b3':  jnp.asarray(b3[:, None], jnp.float32),                   # (C, 1)
    }


def init_params(key, c1, c2, e=0.5):
    c_ = int(c2 * e)
    dc = c1 // 2
    g1 = int(c1 / 4)
    ks = jax.random.split(key, 9)
    return {
        'dc': dc, 'g1': g1, 'c_': c_,
        'pconv_w': 0.2 * jax.random.normal(ks[0], (dc, dc // g1, 3, 3), jnp.float32),
        'w2': 0.2 * jax.random.normal(ks[1], (c_, c1, 1, 1), jnp.float32),
        'bn2': (1.0 + 0.1 * jax.random.normal(ks[2], (c_,), jnp.float32),      # gamma
                0.1 * jax.random.normal(ks[3], (c_,), jnp.float32),            # beta
                0.1 * jax.random.normal(ks[4], (c_,), jnp.float32),            # running_mean
                0.5 + jnp.abs(jax.random.normal(ks[5], (c_,), jnp.float32))),  # running_var
        'w3': 0.2 * jax.random.normal(ks[6], (c2, c_, 1, 1), jnp.float32),
        'bn3': (1.0 + 0.1 * jax.random.normal(ks[7], (c2,), jnp.float32),
                0.1 * jax.random.normal(ks[8], (c2,), jnp.float32),
                jnp.zeros((c2,), jnp.float32),
                jnp.ones((c2,), jnp.float32)),
    }


# --------------------------------------------------------------------------
# Jitted forward: NCHW in / NCHW out, one pallas_call, no transposes.
# --------------------------------------------------------------------------
@jax.jit
def fasternet_forward(x_nchw, folded):
    wt, w2b, b2, w3, b3 = (folded['wt'], folded['w2b'], folded['b2'],
                           folded['w3'], folded['b3'])
    cdtype = wt.dtype
    N, C, H, W = x_nchw.shape
    HW = H * W
    dc = wt.shape[2]
    c_ = wt.shape[1]
    assert w3.shape[0] == C, "shortcut add requires c1 == c2"

    x_flat = x_nchw.reshape(N, C, HW).astype(cdtype)     # channels-first, no transpose

    # Per-tap lane shifts and zero-padding validity masks (computed in XLA,
    # shape-static, 9*HW elements -- tiny).
    ii = jnp.arange(HW, dtype=jnp.int32)
    hh, ww = ii // W, ii % W
    shifts, mrows = [], []
    for dy in range(3):
        for dx in range(3):
            shifts.append((dy - 1) * W + (dx - 1))
            mrows.append((hh + (dy - 1) >= 0) & (hh + (dy - 1) < H) &
                         (ww + (dx - 1) >= 0) & (ww + (dx - 1) < W))
    masks = jnp.stack(mrows).astype(cdtype)               # (9, HW)
    masks = jnp.pad(masks, ((0, 16 - 9), (0, 0)))         # sublane-pad to 16 rows

    kernel = _make_kernel(dc, tuple(shifts), HW)

    out = pl.pallas_call(
        kernel,
        out_shape=jax.ShapeDtypeStruct((N, C, HW), cdtype),
        grid=(N,),
        in_specs=[
            pl.BlockSpec((1, C, HW), lambda n: (n, 0, 0)),        # x (one image)
            pl.BlockSpec((16, HW), lambda n: (0, 0)),             # tap masks
            pl.BlockSpec((9, c_, dc), lambda n: (0, 0, 0)),       # folded tap weights
            pl.BlockSpec((c_, C - dc), lambda n: (0, 0)),         # cv2 untouched part
            pl.BlockSpec((c_, 1), lambda n: (0, 0)),              # BN2 bias
            pl.BlockSpec((C, c_), lambda n: (0, 0)),              # cv3 weight
            pl.BlockSpec((C, 1), lambda n: (0, 0)),               # BN3 bias
        ],
        out_specs=pl.BlockSpec((1, C, HW), lambda n: (n, 0, 0)),
        compiler_params=pltpu.CompilerParams(
            dimension_semantics=("parallel",),
            vmem_limit_bytes=32 * 1024 * 1024),   # conservative: fits v7x 64 MiB VMEM
    )(x_flat, masks, wt, w2b, b2, w3, b3)

    return out.reshape(N, C, H, W)


# --------------------------------------------------------------------------
# Pure-JAX reference (standard convs, f32) for validation.
# --------------------------------------------------------------------------
def ref_forward(x_nchw, params):
    dc, g1 = params['dc'], params['g1']
    x1, x2 = x_nchw[:, :dc], x_nchw[:, dc:]
    y1 = lax.conv_general_dilated(
        x1, params['pconv_w'], (1, 1), ((1, 1), (1, 1)),
        feature_group_count=g1,
        dimension_numbers=('NCHW', 'OIHW', 'NCHW'))
    y = jnp.concatenate([y1, x2], axis=1)

    def conv_bn_silu(z, w, bn):
        gamma, beta, mean, var = bn
        z = lax.conv_general_dilated(z, w, (1, 1), ((0, 0), (0, 0)),
                                     dimension_numbers=('NCHW', 'OIHW', 'NCHW'))
        z = (gamma[None, :, None, None] * (z - mean[None, :, None, None])
             / jnp.sqrt(var + 1e-5)[None, :, None, None]
             + beta[None, :, None, None])
        return z * jax.nn.sigmoid(z)

    z = conv_bn_silu(y, params['w2'], params['bn2'])
    z = conv_bn_silu(z, params['w3'], params['bn3'])
    return x_nchw + z


if __name__ == "__main__":
    key = jax.random.PRNGKey(0)
    kx, kp = jax.random.split(key)

    N, C1, H, W = 2, 16, 16, 16          # FasterNetBlock(c1=16, c2=16), e=0.5 -> c_=8
    C2 = 16

    x = jax.random.normal(kx, (N, C1, H, W), jnp.float32)
    params = init_params(kp, C1, C2)
    ref = jax.block_until_ready(ref_forward(x, params))

    # --- f32 path: tight tolerance vs the f32 reference ------------------
    folded_f32 = prepare_params(params, jnp.float32)
    out_f32 = jax.block_until_ready(fasternet_forward(x, folded_f32))
    assert out_f32.shape == (N, C2, H, W)
    err_f32 = float(jnp.max(jnp.abs(out_f32.astype(jnp.float32) - ref)))
    assert err_f32 < 1e-4, f"f32 kernel mismatch vs reference: max abs err {err_f32}"

    # --- bf16 operand path (v6e/v7x traffic optimization): looser tol ----
    folded_bf16 = prepare_params(params, jnp.bfloat16)
    out_bf16 = jax.block_until_ready(fasternet_forward(x, folded_bf16))
    err_bf16 = float(jnp.max(jnp.abs(out_bf16.astype(jnp.float32) - ref)))
    assert err_bf16 < 1e-1, f"bf16 kernel mismatch vs reference: max abs err {err_bf16}"

    print("KERNEL_OK")
</pallas_src>

<mosaic_0001>
module attributes {stable_mosaic.version = 11 : i64} {
  func.func @kernel(%arg0: i32, %arg1: memref<1x16x256xf32, #tpu.memory_space<vmem>>, %arg2: memref<16x256xf32, #tpu.memory_space<vmem>>, %arg3: memref<9x8x8xf32, #tpu.memory_space<vmem>>, %arg4: memref<8x8xf32, #tpu.memory_space<vmem>>, %arg5: memref<8x1xf32, #tpu.memory_space<vmem>>, %arg6: memref<16x8xf32, #tpu.memory_space<vmem>>, %arg7: memref<16x1xf32, #tpu.memory_space<vmem>>, %arg8: memref<1x16x256xf32, #tpu.memory_space<vmem>>) attributes {dimension_semantics = [#tpu.dimension_semantics<parallel>], iteration_bounds = array<i64: 2>, scalar_prefetch = 0 : i64, scratch_operands = 0 : i64, tpu.core_type = #tpu.core_type<tc>, window_params = [{transform_indices = @transform_0, window_bounds = array<i64: 1, 16, 256>}, {pipeline_mode = #tpu.pipeline_mode<synchronous>, transform_indices = @transform_1, window_bounds = array<i64: 16, 256>}, {pipeline_mode = #tpu.pipeline_mode<synchronous>, transform_indices = @transform_2, window_bounds = array<i64: 9, 8, 8>}, {pipeline_mode = #tpu.pipeline_mode<synchronous>, transform_indices = @transform_3, window_bounds = array<i64: 8, 8>}, {pipeline_mode = #tpu.pipeline_mode<synchronous>, transform_indices = @transform_4, window_bounds = array<i64: 8, 1>}, {pipeline_mode = #tpu.pipeline_mode<synchronous>, transform_indices = @transform_5, window_bounds = array<i64: 16, 8>}, {pipeline_mode = #tpu.pipeline_mode<synchronous>, transform_indices = @transform_6, window_bounds = array<i64: 16, 1>}, {transform_indices = @transform_7, window_bounds = array<i64: 1, 16, 256>}]} {
    %c0 = arith.constant 0 : index
    %c0_0 = arith.constant 0 : index
    %c0_1 = arith.constant 0 : index
    %0 = vector.load %arg1[%c0, %c0_0, %c0_1] : memref<1x16x256xf32, #tpu.memory_space<vmem>>, vector<1x16x256xf32>
    %1 = vector.shape_cast %0 : vector<1x16x256xf32> to vector<16x256xf32>
    %2 = vector.extract_strided_slice %1 {offsets = [0, 0], sizes = [8, 256], strides = [1, 1]} : vector<16x256xf32> to vector<8x256xf32>
    %3 = vector.extract_strided_slice %1 {offsets = [8, 0], sizes = [8, 256], strides = [1, 1]} : vector<16x256xf32> to vector<8x256xf32>
    %c0_2 = arith.constant 0 : index
    %c0_3 = arith.constant 0 : index
    %4 = vector.load %arg2[%c0_2, %c0_3] : memref<16x256xf32, #tpu.memory_space<vmem>>, vector<16x256xf32>
    %c0_4 = arith.constant 0 : index
    %c0_5 = arith.constant 0 : index
    %5 = vector.load %arg4[%c0_4, %c0_5] : memref<8x8xf32, #tpu.memory_space<vmem>>, vector<8x8xf32>
    %cst = arith.constant dense<0.000000e+00> : vector<8x256xf32>
    %6 = tpu.matmul %5, %3, %cst {dimension_numbers = #tpu.dot_dimension_numbers<[1], [0], [0], [1], [0, 0, 1, 1], [], []>} : vector<8x8xf32>, vector<8x256xf32>, vector<8x256xf32> -> vector<8x256xf32>
    %c17_i32 = arith.constant 17 : i32
    %7 = tpu.dynamic_rotate %2 by %c17_i32 dim 1 : vector<8x256xf32>, i32 -> vector<8x256xf32>
    %8 = vector.extract_strided_slice %4 {offsets = [0, 0], sizes = [1, 256], strides = [1, 1]} : vector<16x256xf32> to vector<1x256xf32>
    %9 = vector.broadcast %8 : vector<1x256xf32> to vector<8x256xf32>
    %10 = arith.mulf %7, %9 : vector<8x256xf32>
    %c0_6 = arith.constant 0 : index
    %c0_7 = arith.constant 0 : index
    %c0_8 = arith.constant 0 : index
    %11 = vector.load %arg3[%c0_6, %c0_7, %c0_8] : memref<9x8x8xf32, #tpu.memory_space<vmem>>, vector<1x8x8xf32>
    %12 = vector.shape_cast %11 : vector<1x8x8xf32> to vector<8x8xf32>
    %cst_9 = arith.constant dense<0.000000e+00> : vector<8x256xf32>
    %13 = tpu.matmul %12, %10, %cst_9 {dimension_numbers = #tpu.dot_dimension_numbers<[1], [0], [0], [1], [0, 0, 1, 1], [], []>} : vector<8x8xf32>, vector<8x256xf32>, vector<8x256xf32> -> vector<8x256xf32>
    %14 = arith.addf %6, %13 : vector<8x256xf32>
    %c16_i32 = arith.constant 16 : i32
    %15 = tpu.dynamic_rotate %2 by %c16_i32 dim 1 : vector<8x256xf32>, i32 -> vector<8x256xf32>
    %16 = vector.extract_strided_slice %4 {offsets = [1, 0], sizes = [1, 256], strides = [1, 1]} : vector<16x256xf32> to vector<1x256xf32>
    %17 = vector.broadcast %16 : vector<1x256xf32> to vector<8x256xf32>
    %18 = arith.mulf %15, %17 : vector<8x256xf32>
    %c1 = arith.constant 1 : index
    %c0_10 = arith.constant 0 : index
    %c0_11 = arith.constant 0 : index
    %19 = vector.load %arg3[%c1, %c0_10, %c0_11] : memref<9x8x8xf32, #tpu.memory_space<vmem>>, vector<1x8x8xf32>
    %20 = vector.shape_cast %19 : vector<1x8x8xf32> to vector<8x8xf32>
    %cst_12 = arith.constant dense<0.000000e+00> : vector<8x256xf32>
    %21 = tpu.matmul %20, %18, %cst_12 {dimension_numbers = #tpu.dot_dimension_numbers<[1], [0], [0], [1], [0, 0, 1, 1], [], []>} : vector<8x8xf32>, vector<8x256xf32>, vector<8x256xf32> -> vector<8x256xf32>
    %22 = arith.addf %14, %21 : vector<8x256xf32>
    %c15_i32 = arith.constant 15 : i32
    %23 = tpu.dynamic_rotate %2 by %c15_i32 dim 1 : vector<8x256xf32>, i32 -> vector<8x256xf32>
    %24 = vector.extract_strided_slice %4 {offsets = [2, 0], sizes = [1, 256], strides = [1, 1]} : vector<16x256xf32> to vector<1x256xf32>
    %25 = vector.broadcast %24 : vector<1x256xf32> to vector<8x256xf32>
    %26 = arith.mulf %23, %25 : vector<8x256xf32>
    %c2 = arith.constant 2 : index
    %c0_13 = arith.constant 0 : index
    %c0_14 = arith.constant 0 : index
    %27 = vector.load %arg3[%c2, %c0_13, %c0_14] : memref<9x8x8xf32, #tpu.memory_space<vmem>>, vector<1x8x8xf32>
    %28 = vector.shape_cast %27 : vector<1x8x8xf32> to vector<8x8xf32>
    %cst_15 = arith.constant dense<0.000000e+00> : vector<8x256xf32>
    %29 = tpu.matmul %28, %26, %cst_15 {dimension_numbers = #tpu.dot_dimension_numbers<[1], [0], [0], [1], [0, 0, 1, 1], [], []>} : vector<8x8xf32>, vector<8x256xf32>, vector<8x256xf32> -> vector<8x256xf32>
    %30 = arith.addf %22, %29 : vector<8x256xf32>
    %c1_i32 = arith.constant 1 : i32
    %31 = tpu.dynamic_rotate %2 by %c1_i32 dim 1 : vector<8x256xf32>, i32 -> vector<8x256xf32>
    %32 = vector.extract_strided_slice %4 {offsets = [3, 0], sizes = [1, 256], strides = [1, 1]} : vector<16x256xf32> to vector<1x256xf32>
    %33 = vector.broadcast %32 : vector<1x256xf32> to vector<8x256xf32>
    %34 = arith.mulf %31, %33 : vector<8x256xf32>
    %c3 = arith.constant 3 : index
    %c0_16 = arith.constant 0 : index
    %c0_17 = arith.constant 0 : index
    %35 = vector.load %arg3[%c3, %c0_16, %c0_17] : memref<9x8x8xf32, #tpu.memory_space<vmem>>, vector<1x8x8xf32>
    %36 = vector.shape_cast %35 : vector<1x8x8xf32> to vector<8x8xf32>
    %cst_18 = arith.constant dense<0.000000e+00> : vector<8x256xf32>
    %37 = tpu.matmul %36, %34, %cst_18 {dimension_numbers = #tpu.dot_dimension_numbers<[1], [0], [0], [1], [0, 0, 1, 1], [], []>} : vector<8x8xf32>, vector<8x256xf32>, vector<8x256xf32> -> vector<8x256xf32>
    %38 = arith.addf %30, %37 : vector<8x256xf32>
    %c4 = arith.constant 4 : index
    %c0_19 = arith.constant 0 : index
    %c0_20 = arith.constant 0 : index
    %39 = vector.load %arg3[%c4, %c0_19, %c0_20] : memref<9x8x8xf32, #tpu.memory_space<vmem>>, vector<1x8x8xf32>
    %40 = vector.shape_cast %39 : vector<1x8x8xf32> to vector<8x8xf32>
    %cst_21 = arith.constant dense<0.000000e+00> : vector<8x256xf32>
    %41 = tpu.matmul %40, %2, %cst_21 {dimension_numbers = #tpu.dot_dimension_numbers<[1], [0], [0], [1], [0, 0, 1, 1], [], []>} : vector<8x8xf32>, vector<8x256xf32>, vector<8x256xf32> -> vector<8x256xf32>
    %42 = arith.addf %38, %41 : vector<8x256xf32>
    %c255_i32 = arith.constant 255 : i32
    %43 = tpu.dynamic_rotate %2 by %c255_i32 dim 1 : vector<8x256xf32>, i32 -> vector<8x256xf32>
    %44 = vector.extract_strided_slice %4 {offsets = [5, 0], sizes = [1, 256], strides = [1, 1]} : vector<16x256xf32> to vector<1x256xf32>
    %45 = vector.broadcast %44 : vector<1x256xf32> to vector<8x256xf32>
    %46 = arith.mulf %43, %45 : vector<8x256xf32>
    %c5 = arith.constant 5 : index
    %c0_22 = arith.constant 0 : index
    %c0_23 = arith.constant 0 : index
    %47 = vector.load %arg3[%c5, %c0_22, %c0_23] : memref<9x8x8xf32, #tpu.memory_space<vmem>>, vector<1x8x8xf32>
    %48 = vector.shape_cast %47 : vector<1x8x8xf32> to vector<8x8xf32>
    %cst_24 = arith.constant dense<0.000000e+00> : vector<8x256xf32>
    %49 = tpu.matmul %48, %46, %cst_24 {dimension_numbers = #tpu.dot_dimension_numbers<[1], [0], [0], [1], [0, 0, 1, 1], [], []>} : vector<8x8xf32>, vector<8x256xf32>, vector<8x256xf32> -> vector<8x256xf32>
    %50 = arith.addf %42, %49 : vector<8x256xf32>
    %c241_i32 = arith.constant 241 : i32
    %51 = tpu.dynamic_rotate %2 by %c241_i32 dim 1 : vector<8x256xf32>, i32 -> vector<8x256xf32>
    %52 = vector.extract_strided_slice %4 {offsets = [6, 0], sizes = [1, 256], strides = [1, 1]} : vector<16x256xf32> to vector<1x256xf32>
    %53 = vector.broadcast %52 : vector<1x256xf32> to vector<8x256xf32>
    %54 = arith.mulf %51, %53 : vector<8x256xf32>
    %c6 = arith.constant 6 : index
    %c0_25 = arith.constant 0 : index
    %c0_26 = arith.constant 0 : index
    %55 = vector.load %arg3[%c6, %c0_25, %c0_26] : memref<9x8x8xf32, #tpu.memory_space<vmem>>, vector<1x8x8xf32>
    %56 = vector.shape_cast %55 : vector<1x8x8xf32> to vector<8x8xf32>
    %cst_27 = arith.constant dense<0.000000e+00> : vector<8x256xf32>
    %57 = tpu.matmul %56, %54, %cst_27 {dimension_numbers = #tpu.dot_dimension_numbers<[1], [0], [0], [1], [0, 0, 1, 1], [], []>} : vector<8x8xf32>, vector<8x256xf32>, vector<8x256xf32> -> vector<8x256xf32>
    %58 = arith.addf %50, %57 : vector<8x256xf32>
    %c240_i32 = arith.constant 240 : i32
    %59 = tpu.dynamic_rotate %2 by %c240_i32 dim 1 : vector<8x256xf32>, i32 -> vector<8x256xf32>
    %60 = vector.extract_strided_slice %4 {offsets = [7, 0], sizes = [1, 256], strides = [1, 1]} : vector<16x256xf32> to vector<1x256xf32>
    %61 = vector.broadcast %60 : vector<1x256xf32> to vector<8x256xf32>
    %62 = arith.mulf %59, %61 : vector<8x256xf32>
    %c7 = arith.constant 7 : index
    %c0_28 = arith.constant 0 : index
    %c0_29 = arith.constant 0 : index
    %63 = vector.load %arg3[%c7, %c0_28, %c0_29] : memref<9x8x8xf32, #tpu.memory_space<vmem>>, vector<1x8x8xf32>
    %64 = vector.shape_cast %63 : vector<1x8x8xf32> to vector<8x8xf32>
    %cst_30 = arith.constant dense<0.000000e+00> : vector<8x256xf32>
    %65 = tpu.matmul %64, %62, %cst_30 {dimension_numbers = #tpu.dot_dimension_numbers<[1], [0], [0], [1], [0, 0, 1, 1], [], []>} : vector<8x8xf32>, vector<8x256xf32>, vector<8x256xf32> -> vector<8x256xf32>
    %66 = arith.addf %58, %65 : vector<8x256xf32>
    %c239_i32 = arith.constant 239 : i32
    %67 = tpu.dynamic_rotate %2 by %c239_i32 dim 1 : vector<8x256xf32>, i32 -> vector<8x256xf32>
    %68 = vector.extract_strided_slice %4 {offsets = [8, 0], sizes = [1, 256], strides = [1, 1]} : vector<16x256xf32> to vector<1x256xf32>
    %69 = vector.broadcast %68 : vector<1x256xf32> to vector<8x256xf32>
    %70 = arith.mulf %67, %69 : vector<8x256xf32>
    %c8 = arith.constant 8 : index
    %c0_31 = arith.constant 0 : index
    %c0_32 = arith.constant 0 : index
    %71 = vector.load %arg3[%c8, %c0_31, %c0_32] : memref<9x8x8xf32, #tpu.memory_space<vmem>>, vector<1x8x8xf32>
    %72 = vector.shape_cast %71 : vector<1x8x8xf32> to vector<8x8xf32>
    %cst_33 = arith.constant dense<0.000000e+00> : vector<8x256xf32>
    %73 = tpu.matmul %72, %70, %cst_33 {dimension_numbers = #tpu.dot_dimension_numbers<[1], [0], [0], [1], [0, 0, 1, 1], [], []>} : vector<8x8xf32>, vector<8x256xf32>, vector<8x256xf32> -> vector<8x256xf32>
    %74 = arith.addf %66, %73 : vector<8x256xf32>
    %c0_34 = arith.constant 0 : index
    %c0_35 = arith.constant 0 : index
    %75 = vector.load %arg5[%c0_34, %c0_35] : memref<8x1xf32, #tpu.memory_space<vmem>>, vector<8x1xf32>
    %76 = vector.broadcast %75 : vector<8x1xf32> to vector<8x256xf32>
    %77 = arith.addf %74, %76 : vector<8x256xf32>
    %78 = arith.negf %77 : vector<8x256xf32>
    %79 = math.exp %78 : vector<8x256xf32>
    %cst_36 = arith.constant 1.000000e+00 : f32
    %80 = vector.broadcast %cst_36 : f32 to vector<8x256xf32>
    %81 = arith.addf %80, %79 : vector<8x256xf32>
    %82 = arith.divf %80, %81 : vector<8x256xf32>
    %83 = arith.mulf %77, %82 : vector<8x256xf32>
    %c0_37 = arith.constant 0 : index
    %c0_38 = arith.constant 0 : index
    %84 = vector.load %arg6[%c0_37, %c0_38] : memref<16x8xf32, #tpu.memory_space<vmem>>, vector<16x8xf32>
    %cst_39 = arith.constant dense<0.000000e+00> : vector<16x256xf32>
    %85 = tpu.matmul %84, %83, %cst_39 {dimension_numbers = #tpu.dot_dimension_numbers<[1], [0], [0], [1], [0, 0, 1, 1], [], []>} : vector<16x8xf32>, vector<8x256xf32>, vector<16x256xf32> -> vector<16x256xf32>
    %c0_40 = arith.constant 0 : index
    %c0_41 = arith.constant 0 : index
    %86 = vector.load %arg7[%c0_40, %c0_41] : memref<16x1xf32, #tpu.memory_space<vmem>>, vector<16x1xf32>
    %87 = vector.broadcast %86 : vector<16x1xf32> to vector<16x256xf32>
    %88 = arith.addf %85, %87 : vector<16x256xf32>
    %89 = arith.negf %88 : vector<16x256xf32>
    %90 = math.exp %89 : vector<16x256xf32>
    %cst_42 = arith.constant 1.000000e+00 : f32
    %91 = vector.broadcast %cst_42 : f32 to vector<16x256xf32>
    %92 = arith.addf %91, %90 : vector<16x256xf32>
    %93 = arith.divf %91, %92 : vector<16x256xf32>
    %94 = arith.mulf %88, %93 : vector<16x256xf32>
    %95 = arith.addf %1, %94 : vector<16x256xf32>
    %c0_43 = arith.constant 0 : index
    %c0_44 = arith.constant 0 : index
    %c0_45 = arith.constant 0 : index
    %96 = vector.load %arg8[%c0_43, %c0_44, %c0_45] : memref<1x16x256xf32, #tpu.memory_space<vmem>>, vector<1x16x256xf32>
    %97 = vector.shape_cast %96 : vector<1x16x256xf32> to vector<16x256xf32>
    %98 = vector.shape_cast %95 : vector<16x256xf32> to vector<1x16x256xf32>
    tpu.vector_store %arg8[%c0_43, %c0_44, %c0_45], %98 {strides = array<i32>} : memref<1x16x256xf32, #tpu.memory_space<vmem>>, vector<1x16x256xf32>,
    return
  }
  func.func @transform_0(%arg0: i32) -> (i32, i32, i32) {
    %c0_i32 = arith.constant 0 : i32
    %c0_i32_0 = arith.constant 0 : i32
    %c0_i32_1 = arith.constant 0 : i32
    return %arg0, %c0_i32, %c0_i32_0 : i32, i32, i32
  }
  func.func @transform_1(%arg0: i32) -> (i32, i32) {
    %c0_i32 = arith.constant 0 : i32
    %c0_i32_0 = arith.constant 0 : i32
    %c0_i32_1 = arith.constant 0 : i32
    return %c0_i32, %c0_i32_0 : i32, i32
  }
  func.func @transform_2(%arg0: i32) -> (i32, i32, i32) {
    %c0_i32 = arith.constant 0 : i32
    %c0_i32_0 = arith.constant 0 : i32
    %c0_i32_1 = arith.constant 0 : i32
    %c0_i32_2 = arith.constant 0 : i32
    return %c0_i32, %c0_i32_0, %c0_i32_1 : i32, i32, i32
  }
  func.func @transform_3(%arg0: i32) -> (i32, i32) {
    %c0_i32 = arith.constant 0 : i32
    %c0_i32_0 = arith.constant 0 : i32
    %c0_i32_1 = arith.constant 0 : i32
    return %c0_i32, %c0_i32_0 : i32, i32
  }
  func.func @transform_4(%arg0: i32) -> (i32, i32) {
    %c0_i32 = arith.constant 0 : i32
    %c0_i32_0 = arith.constant 0 : i32
    %c0_i32_1 = arith.constant 0 : i32
    return %c0_i32, %c0_i32_0 : i32, i32
  }
  func.func @transform_5(%arg0: i32) -> (i32, i32) {
    %c0_i32 = arith.constant 0 : i32
    %c0_i32_0 = arith.constant 0 : i32
    %c0_i32_1 = arith.constant 0 : i32
    return %c0_i32, %c0_i32_0 : i32, i32
  }
  func.func @transform_6(%arg0: i32) -> (i32, i32) {
    %c0_i32 = arith.constant 0 : i32
    %c0_i32_0 = arith.constant 0 : i32
    %c0_i32_1 = arith.constant 0 : i32
    return %c0_i32, %c0_i32_0 : i32, i32
  }
  func.func @transform_7(%arg0: i32) -> (i32, i32, i32) {
    %c0_i32 = arith.constant 0 : i32
    %c0_i32_0 = arith.constant 0 : i32
    %c0_i32_1 = arith.constant 0 : i32
    return %arg0, %c0_i32, %c0_i32_0 : i32, i32, i32
  }
}

</mosaic_0001>

<llo_original>
// kernel: fasternet_forward.1
$region0: #{fasternet_forward.1}
  #allocation0 [shape = 'u32[]', space=smem, size = 0x4, offset = 0x4, fixed_abs, tag = 'smem constant byte address 0x4 - core index']
  #allocation1 [shape = 'u32[72,128]{1,0:T(1,128)}', space=vmem, size = 0x9000, scoped, tag = 'internal scratch']
  %s0 = inlined_call_operand.vmem [shape: f32[2,16,256], index: 0, kind: input, shape index: {}]
  %s1 = inlined_call_operand.vmem [shape: f32[16,256], index: 1, kind: input, shape index: {}]
  %s2 = inlined_call_operand.vmem [shape: f32[9,8,8], index: 2, kind: input, shape index: {}]
  %s3 = inlined_call_operand.vmem [shape: f32[8,8], index: 3, kind: input, shape index: {}]
  %s4 = inlined_call_operand.vmem [shape: f32[8,1], index: 4, kind: input, shape index: {}]
  %s5 = inlined_call_operand.vmem [shape: f32[16,8], index: 5, kind: input, shape index: {}]
  %s6 = inlined_call_operand.vmem [shape: f32[16,1], index: 6, kind: input, shape index: {}]
  %s7 = inlined_call_operand.vmem [shape: f32[2,16,256], index: 7, kind: output, shape index: {}]
  %s8 = sld [smem:[#allocation0]]
  $region61: #{fasternet_forward.1} parent=0
    _
  %s10 = ssub.s32 1, %s8
  %s11 = scalar_select 0, %s10, %s8
  loop: start=0, step=1, limit=4
  $region2: #{fasternet_forward.1} parent=0 // loop_pre_header
    _
  $region3: #{fasternet_forward.1} parent=0 // loop_header
    %s13 = sphi 0, %s17
    %p14 = scmp.ge.s32.totalorder %s13, 4
    %s23 = sphi 0, %s25
    %s26 = sphi 0, %s23
    %s27 = sphi 0, %s26
    %s43 = sphi 0, %s27
    %s47 = sphi 0, %s47
    %s49 = sphi 0, %s47
    %s50 = sphi 0, %s49
    %s64 = sphi 0, %s50
    %s68 = sphi 0, %s68
    %s70 = sphi 0, %s68
    %s71 = sphi 0, %s70
    %s85 = sphi 0, %s71
    %s89 = sphi 0, %s89
    %s91 = sphi 0, %s89
    %s92 = sphi 0, %s91
    %s106 = sphi 0, %s92
    %s110 = sphi 0, %s110
    %s112 = sphi 0, %s110
    %s113 = sphi 0, %s112
    %s127 = sphi 0, %s113
    %s131 = sphi 0, %s131
    %s133 = sphi 0, %s131
    %s134 = sphi 0, %s133
    %s148 = sphi 0, %s134
    %s152 = sphi 0, %s152
    %s154 = sphi 0, %s152
    %s155 = sphi 0, %s154
    %s169 = sphi 0, %s155
    %s175 = sphi 0, %s177
    %s178 = sphi 0, %s175
    %s179 = sphi 0, %s178
    %s195 = sphi 0, %s179
  $region4: #{fasternet_forward.1} parent=0 // loop_header_branch
    %16 = sbr.rel (%p14) target = $region8
  $region5: #{fasternet_forward.1} parent=0 // loop_body
    %s18 = ssub.s32 %s13, 1
    %s19 = ssub.s32 %s13, 2
    %s20 = sadd.s32 %s13, 1
    %s21 = ssub.s32 %s13, %s20
    %p22 = scmp.eq.s32.totalorder %s21, 0
    %s24 = sadd.s32 %s23, 1
    %s25 = scalar_select %p22, %s23, %s24
    %p28 = pneg %p22
    %p29 = scmp.eq.s32.totalorder %s13, 1
    %p30 = por %p28, %p29
    %p31 = scmp.ne.s32.totalorder %s23, %s26
    %p32 = scmp.eq.s32.totalorder %s13, 0
    %p33 = por %p31, %p32
    %p34 = scmp.ne.s32.totalorder %s23, %s26
    %p35 = scmp.eq.s32.totalorder %s18, 1
    %p36 = por %p34, %p35
    %p37 = scmp.ne.s32.totalorder %s26, %s27
    %p38 = scmp.eq.s32.totalorder %s18, 0
    %p39 = por %p37, %p38
    %p40 = scmp.ne.s32.totalorder %s26, %s27
    %p41 = scmp.eq.s32.totalorder %s19, 1
    %p42 = por %p40, %p41
    %p44 = scmp.ne.s32.totalorder %s27, %s43
    %p45 = scmp.eq.s32.totalorder %s19, 0
    %p46 = por %p44, %p45
    %s48 = sadd.s32 %s47, 1
    %p51 = scmp.eq.s32.totalorder %s13, 1
    %p52 = scmp.ne.s32.totalorder %s47, %s49
    %p53 = scmp.eq.s32.totalorder %s13, 0
    %p54 = por %p52, %p53
    %p55 = scmp.ne.s32.totalorder %s47, %s49
    %p56 = scmp.eq.s32.totalorder %s18, 1
    %p57 = por %p55, %p56
    %p58 = scmp.ne.s32.totalorder %s49, %s50
    %p59 = scmp.eq.s32.totalorder %s18, 0
    %p60 = por %p58, %p59
    %p61 = scmp.ne.s32.totalorder %s49, %s50
    %p62 = scmp.eq.s32.totalorder %s19, 1
    %p63 = por %p61, %p62
    %p65 = scmp.ne.s32.totalorder %s50, %s64
    %p66 = scmp.eq.s32.totalorder %s19, 0
    %p67 = por %p65, %p66
    %s69 = sadd.s32 %s68, 1
    %p72 = scmp.eq.s32.totalorder %s13, 1
    %p73 = scmp.ne.s32.totalorder %s68, %s70
    %p74 = scmp.eq.s32.totalorder %s13, 0
    %p75 = por %p73, %p74
    %p76 = scmp.ne.s32.totalorder %s68, %s70
    %p77 = scmp.eq.s32.totalorder %s18, 1
    %p78 = por %p76, %p77
    %p79 = scmp.ne.s32.totalorder %s70, %s71
    %p80 = scmp.eq.s32.totalorder %s18, 0
    %p81 = por %p79, %p80
    %p82 = scmp.ne.s32.totalorder %s70, %s71
    %p83 = scmp.eq.s32.totalorder %s19, 1
    %p84 = por %p82, %p83
    %p86 = scmp.ne.s32.totalorder %s71, %s85
    %p87 = scmp.eq.s32.totalorder %s19, 0
    %p88 = por %p86, %p87
    %s90 = sadd.s32 %s89, 1
    %p93 = scmp.eq.s32.totalorder %s13, 1
    %p94 = scmp.ne.s32.totalorder %s89, %s91
    %p95 = scmp.eq.s32.totalorder %s13, 0
    %p96 = por %p94, %p95
    %p97 = scmp.ne.s32.totalorder %s89, %s91
    %p98 = scmp.eq.s32.totalorder %s18, 1
    %p99 = por %p97, %p98
    %p100 = scmp.ne.s32.totalorder %s91, %s92
    %p101 = scmp.eq.s32.totalorder %s18, 0
    %p102 = por %p100, %p101
    %p103 = scmp.ne.s32.totalorder %s91, %s92
    %p104 = scmp.eq.s32.totalorder %s19, 1
    %p105 = por %p103, %p104
    %p107 = scmp.ne.s32.totalorder %s92, %s106
    %p108 = scmp.eq.s32.totalorder %s19, 0
    %p109 = por %p107, %p108
    %s111 = sadd.s32 %s110, 1
    %p114 = scmp.eq.s32.totalorder %s13, 1
    %p115 = scmp.ne.s32.totalorder %s110, %s112
    %p116 = scmp.eq.s32.totalorder %s13, 0
    %p117 = por %p115, %p116
    %p118 = scmp.ne.s32.totalorder %s110, %s112
    %p119 = scmp.eq.s32.totalorder %s18, 1
    %p120 = por %p118, %p119
    %p121 = scmp.ne.s32.totalorder %s112, %s113
    %p122 = scmp.eq.s32.totalorder %s18, 0
    %p123 = por %p121, %p122
    %p124 = scmp.ne.s32.totalorder %s112, %s113
    %p125 = scmp.eq.s32.totalorder %s19, 1
    %p126 = por %p124, %p125
    %p128 = scmp.ne.s32.totalorder %s113, %s127
    %p129 = scmp.eq.s32.totalorder %s19, 0
    %p130 = por %p128, %p129
    %s132 = sadd.s32 %s131, 1
    %p135 = scmp.eq.s32.totalorder %s13, 1
    %p136 = scmp.ne.s32.totalorder %s131, %s133
    %p137 = scmp.eq.s32.totalorder %s13, 0
    %p138 = por %p136, %p137
    %p139 = scmp.ne.s32.totalorder %s131, %s133
    %p140 = scmp.eq.s32.totalorder %s18, 1
    %p141 = por %p139, %p140
    %p142 = scmp.ne.s32.totalorder %s133, %s134
    %p143 = scmp.eq.s32.totalorder %s18, 0
    %p144 = por %p142, %p143
    %p145 = scmp.ne.s32.totalorder %s133, %s134
    %p146 = scmp.eq.s32.totalorder %s19, 1
    %p147 = por %p145, %p146
    %p149 = scmp.ne.s32.totalorder %s134, %s148
    %p150 = scmp.eq.s32.totalorder %s19, 0
    %p151 = por %p149, %p150
    %s153 = sadd.s32 %s152, 1
    %p156 = scmp.eq.s32.totalorder %s13, 1
    %p157 = scmp.ne.s32.totalorder %s152, %s154
    %p158 = scmp.eq.s32.totalorder %s13, 0
    %p159 = por %p157, %p158
    %p160 = scmp.ne.s32.totalorder %s152, %s154
    %p161 = scmp.eq.s32.totalorder %s18, 1
    %p162 = por %p160, %p161
    %p163 = scmp.ne.s32.totalorder %s154, %s155
    %p164 = scmp.eq.s32.totalorder %s18, 0
    %p165 = por %p163, %p164
    %p166 = scmp.ne.s32.totalorder %s154, %s155
    %p167 = scmp.eq.s32.totalorder %s19, 1
    %p168 = por %p166, %p167
    %p170 = scmp.ne.s32.totalorder %s155, %s169
    %p171 = scmp.eq.s32.totalorder %s19, 0
    %p172 = por %p170, %p171
    %s173 = ssub.s32 %s13, %s20
    %p174 = scmp.eq.s32.totalorder %s173, 0
    %s176 = sadd.s32 %s175, 1
    %s177 = scalar_select %p174, %s175, %s176
    %p180 = pneg %p174
    %p181 = scmp.eq.s32.totalorder %s13, 1
    %p182 = por %p180, %p181
    %p183 = scmp.ne.s32.totalorder %s175, %s178
    %p184 = scmp.eq.s32.totalorder %s13, 0
    %p185 = por %p183, %p184
    %p186 = scmp.ne.s32.totalorder %s175, %s178
    %p187 = scmp.eq.s32.totalorder %s18, 1
    %p188 = por %p186, %p187
    %p189 = scmp.ne.s32.totalorder %s178, %s179
    %p190 = scmp.eq.s32.totalorder %s18, 0
    %p191 = por %p189, %p190
    %p192 = scmp.ne.s32.totalorder %s178, %s179
    %p193 = scmp.eq.s32.totalorder %s19, 1
    %p194 = por %p192, %p193
    %p196 = scmp.ne.s32.totalorder %s179, %s195
    %p197 = scmp.eq.s32.totalorder %s19, 0
    %p198 = por %p196, %p197
    %p199 = scmp.le.s32.totalorder 1, %s13
    %p200 = scmp.lt.s32.totalorder %s13, 3
    %p201 = pnand %p199, %p200
    %p202 = pneg %p201
    // Predicated region
    $region9: #{fasternet_forward.1} parent=5 // pred_check
      _
    $region10: #{fasternet_forward.1} parent=5 // pred_check_branch
      %204 = sbr.rel (%p201) target = $region12
    $region11: #{fasternet_forward.1} parent=5 // pred_region
      %s205 = ssub.s32 %s13, 1
      // Predicated region
      $region13: #{fasternet_forward.1} parent=11 // pred_check
        %p206 = pneg %p60
      $region14: #{fasternet_forward.1} parent=11 // pred_check_branch
        %208 = sbr.rel (%p206) target = $region16
      $region15: #{fasternet_forward.1} parent=11 // pred_region
        _
      $region16: #{fasternet_forward.1} parent=11 // pred_fallthru
        _
      // Predicated region
      $region17: #{fasternet_forward.1} parent=11 // pred_check
        %p209 = pneg %p81
      $region18: #{fasternet_forward.1} parent=11 // pred_check_branch
        %211 = sbr.rel (%p209) target = $region20
      $region19: #{fasternet_forward.1} parent=11 // pred_region
        _
      $region20: #{fasternet_forward.1} parent=11 // pred_fallthru
        _
      // Predicated region
      $region21: #{fasternet_forward.1} parent=11 // pred_check
        %p212 = pneg %p102
      $region22: #{fasternet_forward.1} parent=11 // pred_check_branch
        %214 = sbr.rel (%p212) target = $region24
      $region23: #{fasternet_forward.1} parent=11 // pred_region
        _
      $region24: #{fasternet_forward.1} parent=11 // pred_fallthru
        _
      // Predicated region
      $region25: #{fasternet_forward.1} parent=11 // pred_check
        %p215 = pneg %p123
      $region26: #{fasternet_forward.1} parent=11 // pred_check_branch
        %217 = sbr.rel (%p215) target = $region28
      $region27: #{fasternet_forward.1} parent=11 // pred_region
        _
      $region28: #{fasternet_forward.1} parent=11 // pred_fallthru
        _
      // Predicated region
      $region29: #{fasternet_forward.1} parent=11 // pred_check
        %p218 = pneg %p144
      $region30: #{fasternet_forward.1} parent=11 // pred_check_branch
        %220 = sbr.rel (%p218) target = $region32
      $region31: #{fasternet_forward.1} parent=11 // pred_region
        _
      $region32: #{fasternet_forward.1} parent=11 // pred_fallthru
        _
      // Predicated region
      $region33: #{fasternet_forward.1} parent=11 // pred_check
        %p221 = pneg %p165
      $region34: #{fasternet_forward.1} parent=11 // pred_check_branch
        %223 = sbr.rel (%p221) target = $region36
      $region35: #{fasternet_forward.1} parent=11 // pred_region
        _
      $region36: #{fasternet_forward.1} parent=11 // pred_fallthru
        _
    $region12: #{fasternet_forward.1} parent=5 // pred_fallthru
      _
    %p224 = scmp.lt.s32.totalorder %s13, 2
    // Predicated region
    $region37: #{fasternet_forward.1} parent=5 // pred_check
      %p225 = pneg %p224
    $region38: #{fasternet_forward.1} parent=5 // pred_check_branch
      %227 = sbr.rel (%p225) target = $region40
    $region39: #{fasternet_forward.1} parent=5 // pred_region
      // Predicated region
      $region41: #{fasternet_forward.1} parent=39 // pred_check
        %p228 = pneg %p33
      $region42: #{fasternet_forward.1} parent=39 // pred_check_branch
        %230 = sbr.rel (%p228) target = $region44
      $region43: #{fasternet_forward.1} parent=39 // pred_region
        %p231 = scmp.lt.s32.totalorder %s13, 1
        %s232 = scalar_select %p231, %s13, 1
        %s233 = smul.addr %s232, 4
        %s234 = smul.addr %s233, 8
        %s235 = scalar_lea.vmem %s0, %s234
      $region44: #{fasternet_forward.1} parent=39 // pred_fallthru
        _
    $region40: #{fasternet_forward.1} parent=5 // pred_fallthru
      _
    %p236 = scmp.le.s32.totalorder 1, %s13
    %p237 = scmp.lt.s32.totalorder %s13, 3
    %p238 = pnand %p236, %p237
    %p239 = pneg %p238
    // Predicated region
    $region45: #{fasternet_forward.1} parent=5 // pred_check
      _
    $region46: #{fasternet_forward.1} parent=5 // pred_check_branch
      %241 = sbr.rel (%p238) target = $region48
    $region47: #{fasternet_forward.1} parent=5 // pred_region
      %s242 = ssub.s32 %s13, 1
      %p243 = scmp.lt.s32.totalorder %s18, 1
      %s244 = scalar_select %p243, %s18, 1
      %s245 = smul.addr %s244, 4
      %s246 = smul.addr %s245, 8
      %s247 = scalar_lea.vmem %s0, %s246
      %p248 = pneg %p39
      %p249 = pneg %p36
      %p250 = pneg %p60
      %p251 = pneg %p57
      %p252 = pneg %p81
      %p253 = pneg %p78
      %p254 = pneg %p102
      %p255 = pneg %p99
      %p256 = pneg %p123
      %p257 = pneg %p120
      %p258 = pneg %p144
      %p259 = pneg %p141
      %p260 = pneg %p165
      %p261 = pneg %p162
      %p262 = pneg %p191
      %p263 = pneg %p188
      %p264 = scmp.lt.s32.totalorder %s18, 1
      %s265 = scalar_select %p264, %s18, 1
      %s266 = smul.addr %s265, 4
      %s267 = smul.addr %s266, 8
      %s268 = scalar_lea.vmem %s7, %s267
      %p269 = scmp.lt.s32.totalorder %s18, 1
      %s270 = scalar_select %p269, %s18, 1
      %s271 = smul.addr %s270, 4
      %s272 = smul.addr %s271, 8
      %s273 = scalar_lea.vmem %s0, %s272
      %p274 = scmp.lt.s32.totalorder %s18, 1
      %s275 = scalar_select %p274, %s18, 1
      %s276 = smul.addr %s275, 4
      %s277 = smul.addr %s276, 8
      %s278 = scalar_lea.vmem %s7, %s277
      %v279 = vld [vmem:[%s273] sm:$0xff]
      %v280 = vld [vmem:[%s273 + $0x8] sm:$0xff]
      %v281 = vld [vmem:[%s273 + $0x10] sm:$0xff]
      %v282 = vld [vmem:[%s273 + $0x18] sm:$0xff]
      %v283 = vld [vmem:[%s1] sm:$0xff]
      %v284 = vld [vmem:[%s1 + $0x8] sm:$0xff]
      %v285 = vld [vmem:[%s1 + $0x10] sm:$0xff]
      %v286 = vld [vmem:[%s1 + $0x18] sm:$0xff]
      %v287 = vld [vmem:[%s3] sm:$0xff]
      %288 = vrot.lane.b32.xlu0 %v279, 17
      %v289 = vpop.permute.xlu0 %288
      %290 = vrot.lane.b32.xlu0 %v280, 17
      %v291 = vpop.permute.xlu0 %290
      %v292 = vlaneseq
      %v293 = vand.u32 %v292, 127
      %vm294 = vcmp.lt.s32.totalorder %v293, 17
      %v295 = vsel %vm294, %v289, %v291
      %v296 = vsel %vm294, %v291, %v289
      %v297 = vperm.slane %v283, 0
      %v298 = vperm.slane %v284, 0
      %v299 = vmul.f32 %v296, %v297
      %v300 = vmul.f32 %v295, %v298
      %v301 = vld [vmem:[%s2] sm:$0xff]
      %vm302 = vcmask 64512
      %v304 = vsel %vm302, %v301, 0
      %306 = vmatpush.msra.mxu0 0.0
      %307 = vmatpush.msra.mxu0 0.0
      %308 = vmatpush.msra.mxu0 0.0
      %309 = vmatpush.msra.mxu0 0.0
      %310 = vmatpush.msra.mxu0 0.0
      %311 = vmatpush.msra.mxu0 0.0
      %312 = vmatpush.msra.mxu0 0.0
      %313 = vmatpush.msra.mxu0 0.0
      %314 = vmatpush.msra.mxu0 0.0
      %315 = vmatpush.msra.mxu0 0.0
      %316 = vmatpush.msra.mxu0 0.0
      %317 = vmatpush.msra.mxu0 0.0
      %318 = vmatpush.msra.mxu0 0.0
      %319 = vmatpush.msra.mxu0 0.0
      %320 = vmatpush.msra.mxu0 0.0
      %321 = vmatpush.msra.mxu0 %v299
      %322 = vmatmul.f32.gmra.mxu0 %v304
      %v323 = vpop.f32.mrf.mxu0
      %v324 = vadd.f32 0.0, %v323
      %325 = vdwg.mxu0
      %326 = vmatpush.msra.mxu0 0.0
      %327 = vmatpush.msra.mxu0 0.0
      %328 = vmatpush.msra.mxu0 0.0
      %329 = vmatpush.msra.mxu0 0.0
      %330 = vmatpush.msra.mxu0 0.0
      %331 = vmatpush.msra.mxu0 0.0
      %332 = vmatpush.msra.mxu0 0.0
      %333 = vmatpush.msra.mxu0 0.0
      %334 = vmatpush.msra.mxu0 0.0
      %335 = vmatpush.msra.mxu0 0.0
      %336 = vmatpush.msra.mxu0 0.0
      %337 = vmatpush.msra.mxu0 0.0
      %338 = vmatpush.msra.mxu0 0.0
      %339 = vmatpush.msra.mxu0 0.0
      %340 = vmatpush.msra.mxu0 0.0
      %341 = vmatpush.msra.mxu0 %v300
      %342 = vmatmul.f32.gmra.mxu0 %v304
      %v343 = vpop.f32.mrf.mxu0
      %v344 = vadd.f32 0.0, %v343
      %345 = vdwg.mxu0
      %v347 = vsel %vm302, %v287, 0
      %349 = vmatpush.msra.mxu0 0.0
      %350 = vmatpush.msra.mxu0 0.0
      %351 = vmatpush.msra.mxu0 0.0
      %352 = vmatpush.msra.mxu0 0.0
      %353 = vmatpush.msra.mxu0 0.0
      %354 = vmatpush.msra.mxu0 0.0
      %355 = vmatpush.msra.mxu0 0.0
      %356 = vmatpush.msra.mxu0 0.0
      %357 = vmatpush.msra.mxu0 0.0
      %358 = vmatpush.msra.mxu0 0.0
      %359 = vmatpush.msra.mxu0 0.0
      %360 = vmatpush.msra.mxu0 0.0
      %361 = vmatpush.msra.mxu0 0.0
      %362 = vmatpush.msra.mxu0 0.0
      %363 = vmatpush.msra.mxu0 0.0
      %364 = vmatpush.msra.mxu0 %v281
      %365 = vmatmul.f32.gmra.mxu0 %v347
      %v366 = vpop.f32.mrf.mxu0
      %v367 = vadd.f32 %v324, %v366
      %368 = vdwg.mxu0
      %369 = vmatpush.msra.mxu0 0.0
      %370 = vmatpush.msra.mxu0 0.0
      %371 = vmatpush.msra.mxu0 0.0
      %372 = vmatpush.msra.mxu0 0.0
      %373 = vmatpush.msra.mxu0 0.0
      %374 = vmatpush.msra.mxu0 0.0
      %375 = vmatpush.msra.mxu0 0.0
      %376 = vmatpush.msra.mxu0 0.0
      %377 = vmatpush.msra.mxu0 0.0
      %378 = vmatpush.msra.mxu0 0.0
      %379 = vmatpush.msra.mxu0 0.0
      %380 = vmatpush.msra.mxu0 0.0
      %381 = vmatpush.msra.mxu0 0.0
      %382 = vmatpush.msra.mxu0 0.0
      %383 = vmatpush.msra.mxu0 0.0
      %384 = vmatpush.msra.mxu0 %v282
      %385 = vmatmul.f32.gmra.mxu0 %v347
      %v386 = vpop.f32.mrf.mxu0
      %v387 = vadd.f32 %v344, %v386
      %388 = vdwg.mxu0
      %389 = vrot.lane.b32.xlu0 %v279, 16
      %v390 = vpop.permute.xlu0 %389
      %391 = vrot.lane.b32.xlu0 %v280, 16
      %v392 = vpop.permute.xlu0 %391
      %vm393 = vcmp.lt.s32.totalorder %v293, 16
      %v394 = vsel %vm393, %v390, %v392
      %v395 = vsel %vm393, %v392, %v390
      %v396 = vperm.slane %v283, 1
      %v397 = vperm.slane %v284, 1
      %v398 = vmul.f32 %v395, %v396
      %v399 = vmul.f32 %v394, %v397
      %s400 = scalar_lea.vmem %s2, 8
      %v401 = vld [vmem:[%s400] sm:$0xff]
      %v403 = vsel %vm302, %v401, 0
      %405 = vmatpush.msra.mxu0 0.0
      %406 = vmatpush.msra.mxu0 0.0
      %407 = vmatpush.msra.mxu0 0.0
      %408 = vmatpush.msra.mxu0 0.0
      %409 = vmatpush.msra.mxu0 0.0
      %410 = vmatpush.msra.mxu0 0.0
      %411 = vmatpush.msra.mxu0 0.0
      %412 = vmatpush.msra.mxu0 0.0
      %413 = vmatpush.msra.mxu0 0.0
      %414 = vmatpush.msra.mxu0 0.0
      %415 = vmatpush.msra.mxu0 0.0
      %416 = vmatpush.msra.mxu0 0.0
      %417 = vmatpush.msra.mxu0 0.0
      %418 = vmatpush.msra.mxu0 0.0
      %419 = vmatpush.msra.mxu0 0.0
      %420 = vmatpush.msra.mxu0 %v398
      %421 = vmatmul.f32.gmra.mxu0 %v403
      %v422 = vpop.f32.mrf.mxu0
      %v423 = vadd.f32 0.0, %v422
      %424 = vdwg.mxu0
      %425 = vmatpush.msra.mxu0 0.0
      %426 = vmatpush.msra.mxu0 0.0
      %427 = vmatpush.msra.mxu0 0.0
      %428 = vmatpush.msra.mxu0 0.0
      %429 = vmatpush.msra.mxu0 0.0
      %430 = vmatpush.msra.mxu0 0.0
      %431 = vmatpush.msra.mxu0 0.0
      %432 = vmatpush.msra.mxu0 0.0
      %433 = vmatpush.msra.mxu0 0.0
      %434 = vmatpush.msra.mxu0 0.0
      %435 = vmatpush.msra.mxu0 0.0
      %436 = vmatpush.msra.mxu0 0.0
      %437 = vmatpush.msra.mxu0 0.0
      %438 = vmatpush.msra.mxu0 0.0
      %439 = vmatpush.msra.mxu0 0.0
      %440 = vmatpush.msra.mxu0 %v399
      %441 = vmatmul.f32.gmra.mxu0 %v403
      %v442 = vpop.f32.mrf.mxu0
      %v443 = vadd.f32 0.0, %v442
      %444 = vdwg.mxu0
      %v445 = vadd.f32 %v367, %v423
      %v446 = vadd.f32 %v387, %v443
      %447 = vrot.lane.b32.xlu0 %v279, 15
      %v448 = vpop.permute.xlu0 %447
      %449 = vrot.lane.b32.xlu0 %v280, 15
      %v450 = vpop.permute.xlu0 %449
      %vm451 = vcmp.lt.s32.totalorder %v293, 15
      %v452 = vsel %vm451, %v448, %v450
      %v453 = vsel %vm451, %v450, %v448
      %v454 = vperm.slane %v283, 2
      %v455 = vperm.slane %v284, 2
      %v456 = vmul.f32 %v453, %v454
      %v457 = vmul.f32 %v452, %v455
      %s458 = scalar_lea.vmem %s2, 16
      %v459 = vld [vmem:[%s458] sm:$0xff]
      %v461 = vsel %vm302, %v459, 0
      %463 = vmatpush.msra.mxu0 0.0
      %464 = vmatpush.msra.mxu0 0.0
      %465 = vmatpush.msra.mxu0 0.0
      %466 = vmatpush.msra.mxu0 0.0
      %467 = vmatpush.msra.mxu0 0.0
      %468 = vmatpush.msra.mxu0 0.0
      %469 = vmatpush.msra.mxu0 0.0
      %470 = vmatpush.msra.mxu0 0.0
      %471 = vmatpush.msra.mxu0 0.0
      %472 = vmatpush.msra.mxu0 0.0
      %473 = vmatpush.msra.mxu0 0.0
      %474 = vmatpush.msra.mxu0 0.0
      %475 = vmatpush.msra.mxu0 0.0
      %476 = vmatpush.msra.mxu0 0.0
      %477 = vmatpush.msra.mxu0 0.0
      %478 = vmatpush.msra.mxu0 %v456
      %479 = vmatmul.f32.gmra.mxu0 %v461
      %v480 = vpop.f32.mrf.mxu0
      %v481 = vadd.f32 0.0, %v480
      %482 = vdwg.mxu0
      %483 = vmatpush.msra.mxu0 0.0
      %484 = vmatpush.msra.mxu0 0.0
      %485 = vmatpush.msra.mxu0 0.0
      %486 = vmatpush.msra.mxu0 0.0
      %487 = vmatpush.msra.mxu0 0.0
      %488 = vmatpush.msra.mxu0 0.0
      %489 = vmatpush.msra.mxu0 0.0
      %490 = vmatpush.msra.mxu0 0.0
      %491 = vmatpush.msra.mxu0 0.0
      %492 = vmatpush.msra.mxu0 0.0
      %493 = vmatpush.msra.mxu0 0.0
      %494 = vmatpush.msra.mxu0 0.0
      %495 = vmatpush.msra.mxu0 0.0
      %496 = vmatpush.msra.mxu0 0.0
      %497 = vmatpush.msra.mxu0 0.0
      %498 = vmatpush.msra.mxu0 %v457
      %499 = vmatmul.f32.gmra.mxu0 %v461
      %v500 = vpop.f32.mrf.mxu0
      %v501 = vadd.f32 0.0, %v500
      %502 = vdwg.mxu0
      %v503 = vadd.f32 %v445, %v481
      %v504 = vadd.f32 %v446, %v501
      %505 = vrot.lane.b32.xlu0 %v279, 1
      %v506 = vpop.permute.xlu0 %505
      %507 = vrot.lane.b32.xlu0 %v280, 1
      %v508 = vpop.permute.xlu0 %507
      %vm509 = vcmp.lt.s32.totalorder %v293, 1
      %v510 = vsel %vm509, %v506, %v508
      %v511 = vsel %vm509, %v508, %v506
      %v512 = vperm.slane %v283, 3
      %v513 = vperm.slane %v284, 3
      %v514 = vmul.f32 %v511, %v512
      %v515 = vmul.f32 %v510, %v513
      %s516 = scalar_lea.vmem %s2, 24
      %v517 = vld [vmem:[%s516] sm:$0xff]
      %v519 = vsel %vm302, %v517, 0
      %521 = vmatpush.msra.mxu0 0.0
      %522 = vmatpush.msra.mxu0 0.0
      %523 = vmatpush.msra.mxu0 0.0
      %524 = vmatpush.msra.mxu0 0.0
      %525 = vmatpush.msra.mxu0 0.0
      %526 = vmatpush.msra.mxu0 0.0
      %527 = vmatpush.msra.mxu0 0.0
      %528 = vmatpush.msra.mxu0 0.0
      %529 = vmatpush.msra.mxu0 0.0
      %530 = vmatpush.msra.mxu0 0.0
      %531 = vmatpush.msra.mxu0 0.0
      %532 = vmatpush.msra.mxu0 0.0
      %533 = vmatpush.msra.mxu0 0.0
      %534 = vmatpush.msra.mxu0 0.0
      %535 = vmatpush.msra.mxu0 0.0
      %536 = vmatpush.msra.mxu0 %v514
      %537 = vmatmul.f32.gmra.mxu0 %v519
      %v538 = vpop.f32.mrf.mxu0
      %v539 = vadd.f32 0.0, %v538
      %540 = vdwg.mxu0
      %541 = vmatpush.msra.mxu0 0.0
      %542 = vmatpush.msra.mxu0 0.0
      %543 = vmatpush.msra.mxu0 0.0
      %544 = vmatpush.msra.mxu0 0.0
      %545 = vmatpush.msra.mxu0 0.0
      %546 = vmatpush.msra.mxu0 0.0
      %547 = vmatpush.msra.mxu0 0.0
      %548 = vmatpush.msra.mxu0 0.0
      %549 = vmatpush.msra.mxu0 0.0
      %550 = vmatpush.msra.mxu0 0.0
      %551 = vmatpush.msra.mxu0 0.0
      %552 = vmatpush.msra.mxu0 0.0
      %553 = vmatpush.msra.mxu0 0.0
      %554 = vmatpush.msra.mxu0 0.0
      %555 = vmatpush.msra.mxu0 0.0
      %556 = vmatpush.msra.mxu0 %v515
      %557 = vmatmul.f32.gmra.mxu0 %v519
      %v558 = vpop.f32.mrf.mxu0
      %v559 = vadd.f32 0.0, %v558
      %560 = vdwg.mxu0
      %v561 = vadd.f32 %v503, %v539
      %v562 = vadd.f32 %v504, %v559
      %s563 = scalar_lea.vmem %s2, 32
      %v564 = vld [vmem:[%s563] sm:$0xff]
      %v566 = vsel %vm302, %v564, 0
      %568 = vmatpush.msra.mxu0 0.0
      %569 = vmatpush.msra.mxu0 0.0
      %570 = vmatpush.msra.mxu0 0.0
      %571 = vmatpush.msra.mxu0 0.0
      %572 = vmatpush.msra.mxu0 0.0
      %573 = vmatpush.msra.mxu0 0.0
      %574 = vmatpush.msra.mxu0 0.0
      %575 = vmatpush.msra.mxu0 0.0
      %576 = vmatpush.msra.mxu0 0.0
      %577 = vmatpush.msra.mxu0 0.0
      %578 = vmatpush.msra.mxu0 0.0
      %579 = vmatpush.msra.mxu0 0.0
      %580 = vmatpush.msra.mxu0 0.0
      %581 = vmatpush.msra.mxu0 0.0
      %582 = vmatpush.msra.mxu0 0.0
      %583 = vmatpush.msra.mxu0 %v279
      %584 = vmatmul.f32.gmra.mxu0 %v566
      %v585 = vpop.f32.mrf.mxu0
      %v586 = vadd.f32 0.0, %v585
      %587 = vdwg.mxu0
      %588 = vmatpush.msra.mxu0 0.0
      %589 = vmatpush.msra.mxu0 0.0
      %590 = vmatpush.msra.mxu0 0.0
      %591 = vmatpush.msra.mxu0 0.0
      %592 = vmatpush.msra.mxu0 0.0
      %593 = vmatpush.msra.mxu0 0.0
      %594 = vmatpush.msra.mxu0 0.0
      %595 = vmatpush.msra.mxu0 0.0
      %596 = vmatpush.msra.mxu0 0.0
      %597 = vmatpush.msra.mxu0 0.0
      %598 = vmatpush.msra.mxu0 0.0
      %599 = vmatpush.msra.mxu0 0.0
      %600 = vmatpush.msra.mxu0 0.0
      %601 = vmatpush.msra.mxu0 0.0
      %602 = vmatpush.msra.mxu0 0.0
      %603 = vmatpush.msra.mxu0 %v280
      %604 = vmatmul.f32.gmra.mxu0 %v566
      %v605 = vpop.f32.mrf.mxu0
      %v606 = vadd.f32 0.0, %v605
      %607 = vdwg.mxu0
      %v608 = vadd.f32 %v561, %v586
      %v609 = vadd.f32 %v562, %v606
      %610 = vrot.lane.b32.xlu0 %v279, 127
      %v611 = vpop.permute.xlu0 %610
      %612 = vrot.lane.b32.xlu0 %v280, 127
      %v613 = vpop.permute.xlu0 %612
      %vm614 = vcmp.lt.s32.totalorder %v293, 127
      %v615 = vsel %vm614, %v611, %v613
      %v616 = vsel %vm614, %v613, %v611
      %v617 = vperm.slane %v283, 5
      %v618 = vperm.slane %v284, 5
      %v619 = vmul.f32 %v615, %v617
      %v620 = vmul.f32 %v616, %v618
      %s621 = scalar_lea.vmem %s2, 40
      %v622 = vld [vmem:[%s621] sm:$0xff]
      %v624 = vsel %vm302, %v622, 0
      %626 = vmatpush.msra.mxu0 0.0
      %627 = vmatpush.msra.mxu0 0.0
      %628 = vmatpush.msra.mxu0 0.0
      %629 = vmatpush.msra.mxu0 0.0
      %630 = vmatpush.msra.mxu0 0.0
      %631 = vmatpush.msra.mxu0 0.0
      %632 = vmatpush.msra.mxu0 0.0
      %633 = vmatpush.msra.mxu0 0.0
      %634 = vmatpush.msra.mxu0 0.0
      %635 = vmatpush.msra.mxu0 0.0
      %636 = vmatpush.msra.mxu0 0.0
      %637 = vmatpush.msra.mxu0 0.0
      %638 = vmatpush.msra.mxu0 0.0
      %639 = vmatpush.msra.mxu0 0.0
      %640 = vmatpush.msra.mxu0 0.0
      %641 = vmatpush.msra.mxu0 %v619
      %642 = vmatmul.f32.gmra.mxu0 %v624
      %v643 = vpop.f32.mrf.mxu0
      %v644 = vadd.f32 0.0, %v643
      %645 = vdwg.mxu0
      %646 = vmatpush.msra.mxu0 0.0
      %647 = vmatpush.msra.mxu0 0.0
      %648 = vmatpush.msra.mxu0 0.0
      %649 = vmatpush.msra.mxu0 0.0
      %650 = vmatpush.msra.mxu0 0.0
      %651 = vmatpush.msra.mxu0 0.0
      %652 = vmatpush.msra.mxu0 0.0
      %653 = vmatpush.msra.mxu0 0.0
      %654 = vmatpush.msra.mxu0 0.0
      %655 = vmatpush.msra.mxu0 0.0
      %656 = vmatpush.msra.mxu0 0.0
      %657 = vmatpush.msra.mxu0 0.0
      %658 = vmatpush.msra.mxu0 0.0
      %659 = vmatpush.msra.mxu0 0.0
      %660 = vmatpush.msra.mxu0 0.0
      %661 = vmatpush.msra.mxu0 %v620
      %662 = vmatmul.f32.gmra.mxu0 %v624
      %v663 = vpop.f32.mrf.mxu0
      %v664 = vadd.f32 0.0, %v663
      %665 = vdwg.mxu0
      %v666 = vadd.f32 %v608, %v644
      %v667 = vadd.f32 %v609, %v664
      %668 = vrot.lane.b32.xlu0 %v279, 113
      %v669 = vpop.permute.xlu0 %668
      %670 = vrot.lane.b32.xlu0 %v280, 113
      %v671 = vpop.permute.xlu0 %670
      %vm672 = vcmp.lt.s32.totalorder %v293, 113
      %v673 = vsel %vm672, %v669, %v671
      %v674 = vsel %vm672, %v671, %v669
      %v675 = vperm.slane %v283, 6
      %v676 = vperm.slane %v284, 6
      %v677 = vmul.f32 %v673, %v675
      %v678 = vmul.f32 %v674, %v676
      %s679 = scalar_lea.vmem %s2, 48
      %v680 = vld [vmem:[%s679] sm:$0xff]
      %v682 = vsel %vm302, %v680, 0
      %684 = vmatpush.msra.mxu0 0.0
      %685 = vmatpush.msra.mxu0 0.0
      %686 = vmatpush.msra.mxu0 0.0
      %687 = vmatpush.msra.mxu0 0.0
      %688 = vmatpush.msra.mxu0 0.0
      %689 = vmatpush.msra.mxu0 0.0
      %690 = vmatpush.msra.mxu0 0.0
      %691 = vmatpush.msra.mxu0 0.0
      %692 = vmatpush.msra.mxu0 0.0
      %693 = vmatpush.msra.mxu0 0.0
      %694 = vmatpush.msra.mxu0 0.0
      %695 = vmatpush.msra.mxu0 0.0
      %696 = vmatpush.msra.mxu0 0.0
      %697 = vmatpush.msra.mxu0 0.0
      %698 = vmatpush.msra.mxu0 0.0
      %699 = vmatpush.msra.mxu0 %v677
      %700 = vmatmul.f32.gmra.mxu0 %v682
      %v701 = vpop.f32.mrf.mxu0
      %v702 = vadd.f32 0.0, %v701
      %703 = vdwg.mxu0
      %704 = vmatpush.msra.mxu0 0.0
      %705 = vmatpush.msra.mxu0 0.0
      %706 = vmatpush.msra.mxu0 0.0
      %707 = vmatpush.msra.mxu0 0.0
      %708 = vmatpush.msra.mxu0 0.0
      %709 = vmatpush.msra.mxu0 0.0
      %710 = vmatpush.msra.mxu0 0.0
      %711 = vmatpush.msra.mxu0 0.0
      %712 = vmatpush.msra.mxu0 0.0
      %713 = vmatpush.msra.mxu0 0.0
      %714 = vmatpush.msra.mxu0 0.0
      %715 = vmatpush.msra.mxu0 0.0
      %716 = vmatpush.msra.mxu0 0.0
      %717 = vmatpush.msra.mxu0 0.0
      %718 = vmatpush.msra.mxu0 0.0
      %719 = vmatpush.msra.mxu0 %v678
      %720 = vmatmul.f32.gmra.mxu0 %v682
      %v721 = vpop.f32.mrf.mxu0
      %v722 = vadd.f32 0.0, %v721
      %723 = vdwg.mxu0
      %v724 = vadd.f32 %v666, %v702
      %v725 = vadd.f32 %v667, %v722
      %726 = vrot.lane.b32.xlu0 %v279, 112
      %v727 = vpop.permute.xlu0 %726
      %728 = vrot.lane.b32.xlu0 %v280, 112
      %v729 = vpop.permute.xlu0 %728
      %vm730 = vcmp.lt.s32.totalorder %v293, 112
      %v731 = vsel %vm730, %v727, %v729
      %v732 = vsel %vm730, %v729, %v727
      %v733 = vperm.slane %v283, 7
      %v734 = vperm.slane %v284, 7
      %v735 = vmul.f32 %v731, %v733
      %v736 = vmul.f32 %v732, %v734
      %s737 = scalar_lea.vmem %s2, 56
      %v738 = vld [vmem:[%s737] sm:$0xff]
      %v740 = vsel %vm302, %v738, 0
      %742 = vmatpush.msra.mxu0 0.0
      %743 = vmatpush.msra.mxu0 0.0
      %744 = vmatpush.msra.mxu0 0.0
      %745 = vmatpush.msra.mxu0 0.0
      %746 = vmatpush.msra.mxu0 0.0
      %747 = vmatpush.msra.mxu0 0.0
      %748 = vmatpush.msra.mxu0 0.0
      %749 = vmatpush.msra.mxu0 0.0
      %750 = vmatpush.msra.mxu0 0.0
      %751 = vmatpush.msra.mxu0 0.0
      %752 = vmatpush.msra.mxu0 0.0
      %753 = vmatpush.msra.mxu0 0.0
      %754 = vmatpush.msra.mxu0 0.0
      %755 = vmatpush.msra.mxu0 0.0
      %756 = vmatpush.msra.mxu0 0.0
      %757 = vmatpush.msra.mxu0 %v735
      %758 = vmatmul.f32.gmra.mxu0 %v740
      %v759 = vpop.f32.mrf.mxu0
      %v760 = vadd.f32 0.0, %v759
      %761 = vdwg.mxu0
      %762 = vmatpush.msra.mxu0 0.0
      %763 = vmatpush.msra.mxu0 0.0
      %764 = vmatpush.msra.mxu0 0.0
      %765 = vmatpush.msra.mxu0 0.0
      %766 = vmatpush.msra.mxu0 0.0
      %767 = vmatpush.msra.mxu0 0.0
      %768 = vmatpush.msra.mxu0 0.0
      %769 = vmatpush.msra.mxu0 0.0
      %770 = vmatpush.msra.mxu0 0.0
      %771 = vmatpush.msra.mxu0 0.0
      %772 = vmatpush.msra.mxu0 0.0
      %773 = vmatpush.msra.mxu0 0.0
      %774 = vmatpush.msra.mxu0 0.0
      %775 = vmatpush.msra.mxu0 0.0
      %776 = vmatpush.msra.mxu0 0.0
      %777 = vmatpush.msra.mxu0 %v736
      %778 = vmatmul.f32.gmra.mxu0 %v740
      %v779 = vpop.f32.mrf.mxu0
      %v780 = vadd.f32 0.0, %v779
      %781 = vdwg.mxu0
      %v782 = vadd.f32 %v724, %v760
      %v783 = vadd.f32 %v725, %v780
      %784 = vrot.lane.b32.xlu0 %v279, 111
      %v785 = vpop.permute.xlu0 %784
      %786 = vrot.lane.b32.xlu0 %v280, 111
      %v787 = vpop.permute.xlu0 %786
      %vm788 = vcmp.lt.s32.totalorder %v293, 111
      %v789 = vsel %vm788, %v785, %v787
      %v790 = vsel %vm788, %v787, %v785
      %v791 = vperm.slane %v285, 0
      %v792 = vperm.slane %v286, 0
      %v793 = vmul.f32 %v789, %v791
      %v794 = vmul.f32 %v790, %v792
      %s795 = scalar_lea.vmem %s2, 64
      %v796 = vld [vmem:[%s795] sm:$0xff]
      %v798 = vsel %vm302, %v796, 0
      %800 = vmatpush.msra.mxu0 0.0
      %801 = vmatpush.msra.mxu0 0.0
      %802 = vmatpush.msra.mxu0 0.0
      %803 = vmatpush.msra.mxu0 0.0
      %804 = vmatpush.msra.mxu0 0.0
      %805 = vmatpush.msra.mxu0 0.0
      %806 = vmatpush.msra.mxu0 0.0
      %807 = vmatpush.msra.mxu0 0.0
      %808 = vmatpush.msra.mxu0 0.0
      %809 = vmatpush.msra.mxu0 0.0
      %810 = vmatpush.msra.mxu0 0.0
      %811 = vmatpush.msra.mxu0 0.0
      %812 = vmatpush.msra.mxu0 0.0
      %813 = vmatpush.msra.mxu0 0.0
      %814 = vmatpush.msra.mxu0 0.0
      %815 = vmatpush.msra.mxu0 %v793
      %816 = vmatmul.f32.gmra.mxu0 %v798
      %v817 = vpop.f32.mrf.mxu0
      %v818 = vadd.f32 0.0, %v817
      %819 = vdwg.mxu0
      %820 = vmatpush.msra.mxu0 0.0
      %821 = vmatpush.msra.mxu0 0.0
      %822 = vmatpush.msra.mxu0 0.0
      %823 = vmatpush.msra.mxu0 0.0
      %824 = vmatpush.msra.mxu0 0.0
      %825 = vmatpush.msra.mxu0 0.0
      %826 = vmatpush.msra.mxu0 0.0
      %827 = vmatpush.msra.mxu0 0.0
      %828 = vmatpush.msra.mxu0 0.0
      %829 = vmatpush.msra.mxu0 0.0
      %830 = vmatpush.msra.mxu0 0.0
      %831 = vmatpush.msra.mxu0 0.0
      %832 = vmatpush.msra.mxu0 0.0
      %833 = vmatpush.msra.mxu0 0.0
      %834 = vmatpush.msra.mxu0 0.0
      %835 = vmatpush.msra.mxu0 %v794
      %836 = vmatmul.f32.gmra.mxu0 %v798
      %v837 = vpop.f32.mrf.mxu0
      %v838 = vadd.f32 0.0, %v837
      %839 = vdwg.mxu0
      %v840 = vadd.f32 %v782, %v818
      %v841 = vadd.f32 %v783, %v838
      %v842 = vld [vmem:[%s4] sm:$0xff]
      %844 = vset.pattern.permute.xlu0 0
      %845 = vperm.xlu0 %844, %v842
      %v846 = vpop.permute.xlu0 %845
      %v848 = vadd.f32 %v840, %v846
      %v849 = vadd.f32 %v841, %v846
      %v850 = vxor.u32 %v848, 2147483648
      %v851 = vxor.u32 %v849, 2147483648
      %v852 = vmul.f32 %v850, 1.442695
      %v853 = vpow.pop %v852
      %v854 = vmul.f32 %v851, 1.442695
      %v855 = vpow.pop %v854
      %v856 = vadd.f32 %v853, 1.0
      %v857 = vadd.f32 %v855, 1.0
      %v858 = vrcp.pop %v856
      %v859 = vmul.f32 %v856, %v858
      %v860 = vsub.f32 1.0, %v859
      %v861 = vmul.f32 %v858, %v860
      %v862 = vadd.f32 %v858, %v861
      %vm863 = vweird.f32 %v856
      %vm864 = vweird.f32 %v858
      %vm865 = vmor %vm863, %vm864
      %v866 = vsel %vm865, %v858, %v862
      %v867 = vand.u32 2147483647, %v856
      %vm868 = vcmp.eq.f32.partialorder %v867, 8.507059e+37
      %v869 = vand.u32 %v856, 2147483648
      %v870 = vor.u32 1.1754944e-38, %v869
      %v871 = vsel %vm868, %v870, %v866
      %v872 = vmul.f32 1.0, %v871
      %v873 = vrcp.pop %v857
      %v874 = vmul.f32 %v857, %v873
      %v875 = vsub.f32 1.0, %v874
      %v876 = vmul.f32 %v873, %v875
      %v877 = vadd.f32 %v873, %v876
      %vm878 = vweird.f32 %v857
      %vm879 = vweird.f32 %v873
      %vm880 = vmor %vm878, %vm879
      %v881 = vsel %vm880, %v873, %v877
      %v882 = vand.u32 2147483647, %v857
      %vm883 = vcmp.eq.f32.partialorder %v882, 8.507059e+37
      %v884 = vand.u32 %v857, 2147483648
      %v885 = vor.u32 1.1754944e-38, %v884
      %v886 = vsel %vm883, %v885, %v881
      %v887 = vmul.f32 1.0, %v886
      %v888 = vmul.f32 %v848, %v872
      %v889 = vmul.f32 %v849, %v887
      %v890 = vld [vmem:[%s5] sm:$0xff]
      %v891 = vld [vmem:[%s5 + $0x8] sm:$0xff]
      %v892 = vld [vmem:[%s6] sm:$0xff]
      %v893 = vld [vmem:[%s6 + $0x8] sm:$0xff]
      %895 = vset.pattern.permute.xlu0 0
      %896 = vperm.xlu0 %895, %v892
      %v897 = vpop.permute.xlu0 %896
      %900 = vset.pattern.permute.xlu0 0
      %901 = vperm.xlu0 %900, %v893
      %v902 = vpop.permute.xlu0 %901
      %v905 = vsel %vm302, %v890, 0
      %v908 = vsel %vm302, %v891, 0
      %910 = vmatpush.msra.mxu0 0.0
      %911 = vmatpush.msra.mxu0 0.0
      %912 = vmatpush.msra.mxu0 0.0
      %913 = vmatpush.msra.mxu0 0.0
      %914 = vmatpush.msra.mxu0 0.0
      %915 = vmatpush.msra.mxu0 0.0
      %916 = vmatpush.msra.mxu0 0.0
      %917 = vmatpush.msra.mxu0 0.0
      %918 = vmatpush.msra.mxu0 0.0
      %919 = vmatpush.msra.mxu0 0.0
      %920 = vmatpush.msra.mxu0 0.0
      %921 = vmatpush.msra.mxu0 0.0
      %922 = vmatpush.msra.mxu0 0.0
      %923 = vmatpush.msra.mxu0 0.0
      %924 = vmatpush.msra.mxu0 0.0
      %925 = vmatpush.msra.mxu0 %v888
      %926 = vmatmul.f32.gmra.mxu0 %v905
      %v927 = vpop.f32.mrf.mxu0
      %v928 = vadd.f32 %v897, %v927
      %929 = vmatmul.f32.gmra.mxu0 %v908
      %v930 = vpop.f32.mrf.mxu0
      %v931 = vadd.f32 %v902, %v930
      %932 = vdwg.mxu0
      %933 = vmatpush.msra.mxu0 0.0
      %934 = vmatpush.msra.mxu0 0.0
      %935 = vmatpush.msra.mxu0 0.0
      %936 = vmatpush.msra.mxu0 0.0
      %937 = vmatpush.msra.mxu0 0.0
      %938 = vmatpush.msra.mxu0 0.0
      %939 = vmatpush.msra.mxu0 0.0
      %940 = vmatpush.msra.mxu0 0.0
      %941 = vmatpush.msra.mxu0 0.0
      %942 = vmatpush.msra.mxu0 0.0
      %943 = vmatpush.msra.mxu0 0.0
      %944 = vmatpush.msra.mxu0 0.0
      %945 = vmatpush.msra.mxu0 0.0
      %946 = vmatpush.msra.mxu0 0.0
      %947 = vmatpush.msra.mxu0 0.0
      %948 = vmatpush.msra.mxu0 %v889
      %949 = vmatmul.f32.gmra.mxu0 %v905
      %v950 = vpop.f32.mrf.mxu0
      %v951 = vadd.f32 %v897, %v950
      %952 = vmatmul.f32.gmra.mxu0 %v908
      %v953 = vpop.f32.mrf.mxu0
      %v954 = vadd.f32 %v902, %v953
      %955 = vdwg.mxu0
      %v956 = vxor.u32 %v928, 2147483648
      %v957 = vxor.u32 %v951, 2147483648
      %v958 = vxor.u32 %v931, 2147483648
      %v959 = vxor.u32 %v954, 2147483648
      %v960 = vmul.f32 %v956, 1.442695
      %v961 = vpow.pop %v960
      %v962 = vmul.f32 %v957, 1.442695
      %v963 = vpow.pop %v962
      %v964 = vmul.f32 %v958, 1.442695
      %v965 = vpow.pop %v964
      %v966 = vmul.f32 %v959, 1.442695
      %v967 = vpow.pop %v966
      %v968 = vadd.f32 %v961, 1.0
      %v969 = vadd.f32 %v963, 1.0
      %v970 = vadd.f32 %v965, 1.0
      %v971 = vadd.f32 %v967, 1.0
      %v972 = vrcp.pop %v968
      %v973 = vmul.f32 %v968, %v972
      %v974 = vsub.f32 1.0, %v973
      %v975 = vmul.f32 %v972, %v974
      %v976 = vadd.f32 %v972, %v975
      %vm977 = vweird.f32 %v968
      %vm978 = vweird.f32 %v972
      %vm979 = vmor %vm977, %vm978
      %v980 = vsel %vm979, %v972, %v976
      %v981 = vand.u32 2147483647, %v968
      %vm982 = vcmp.eq.f32.partialorder %v981, 8.507059e+37
      %v983 = vand.u32 %v968, 2147483648
      %v984 = vor.u32 1.1754944e-38, %v983
      %v985 = vsel %vm982, %v984, %v980
      %v986 = vmul.f32 1.0, %v985
      %v987 = vrcp.pop %v969
      %v988 = vmul.f32 %v969, %v987
      %v989 = vsub.f32 1.0, %v988
      %v990 = vmul.f32 %v987, %v989
      %v991 = vadd.f32 %v987, %v990
      %vm992 = vweird.f32 %v969
      %vm993 = vweird.f32 %v987
      %vm994 = vmor %vm992, %vm993
      %v995 = vsel %vm994, %v987, %v991
      %v996 = vand.u32 2147483647, %v969
      %vm997 = vcmp.eq.f32.partialorder %v996, 8.507059e+37
      %v998 = vand.u32 %v969, 2147483648
      %v999 = vor.u32 1.1754944e-38, %v998
      %v1000 = vsel %vm997, %v999, %v995
      %v1001 = vmul.f32 1.0, %v1000
      %v1002 = vrcp.pop %v970
      %v1003 = vmul.f32 %v970, %v1002
      %v1004 = vsub.f32 1.0, %v1003
      %v1005 = vmul.f32 %v1002, %v1004
      %v1006 = vadd.f32 %v1002, %v1005
      %vm1007 = vweird.f32 %v970
      %vm1008 = vweird.f32 %v1002
      %vm1009 = vmor %vm1007, %vm1008
      %v1010 = vsel %vm1009, %v1002, %v1006
      %v1011 = vand.u32 2147483647, %v970
      %vm1012 = vcmp.eq.f32.partialorder %v1011, 8.507059e+37
      %v1013 = vand.u32 %v970, 2147483648
      %v1014 = vor.u32 1.1754944e-38, %v1013
      %v1015 = vsel %vm1012, %v1014, %v1010
      %v1016 = vmul.f32 1.0, %v1015
      %v1017 = vrcp.pop %v971
      %v1018 = vmul.f32 %v971, %v1017
      %v1019 = vsub.f32 1.0, %v1018
      %v1020 = vmul.f32 %v1017, %v1019
      %v1021 = vadd.f32 %v1017, %v1020
      %vm1022 = vweird.f32 %v971
      %vm1023 = vweird.f32 %v1017
      %vm1024 = vmor %vm1022, %vm1023
      %v1025 = vsel %vm1024, %v1017, %v1021
      %v1026 = vand.u32 2147483647, %v971
      %vm1027 = vcmp.eq.f32.partialorder %v1026, 8.507059e+37
      %v1028 = vand.u32 %v971, 2147483648
      %v1029 = vor.u32 1.1754944e-38, %v1028
      %v1030 = vsel %vm1027, %v1029, %v1025
      %v1031 = vmul.f32 1.0, %v1030
      %v1032 = vmul.f32 %v928, %v986
      %v1033 = vmul.f32 %v951, %v1001
      %v1034 = vmul.f32 %v931, %v1016
      %v1035 = vmul.f32 %v954, %v1031
      %v1036 = vadd.f32 %v279, %v1032
      %v1037 = vadd.f32 %v280, %v1033
      %v1038 = vadd.f32 %v281, %v1034
      %v1039 = vadd.f32 %v282, %v1035
      %1040 = vst [vmem:[%s278] sm:$0xff] %v1036
      %1041 = vst [vmem:[%s278 + $0x8] sm:$0xff] %v1037
      %1042 = vst [vmem:[%s278 + $0x10] sm:$0xff] %v1038
      %1043 = vst [vmem:[%s278 + $0x18] sm:$0xff] %v1039
      %p1044 = scmp.lt.s32.totalorder %s18, 1
      %s1045 = scalar_select %p1044, %s18, 1
      %s1046 = smul.addr %s1045, 4
      %s1047 = smul.addr %s1046, 8
      %s1048 = scalar_lea.vmem %s7, %s1047
      // Predicated region
      $region49: #{fasternet_forward.1} parent=47 // pred_check
        %p1049 = pneg %p188
      $region50: #{fasternet_forward.1} parent=47 // pred_check_branch
        %1051 = sbr.rel (%p1049) target = $region52
      $region51: #{fasternet_forward.1} parent=47 // pred_region
        _
      $region52: #{fasternet_forward.1} parent=47 // pred_fallthru
        _
    $region48: #{fasternet_forward.1} parent=5 // pred_fallthru
      _
    %p1052 = scmp.le.s32.totalorder 2, %s13
    // Predicated region
    $region53: #{fasternet_forward.1} parent=5 // pred_check
      %p1053 = pneg %p1052
    $region54: #{fasternet_forward.1} parent=5 // pred_check_branch
      %1055 = sbr.rel (%p1053) target = $region56
    $region55: #{fasternet_forward.1} parent=5 // pred_region
      %s1056 = ssub.s32 %s13, 2
      // Predicated region
      $region57: #{fasternet_forward.1} parent=55 // pred_check
        %p1057 = pneg %p194
      $region58: #{fasternet_forward.1} parent=55 // pred_check_branch
        %1059 = sbr.rel (%p1057) target = $region60
      $region59: #{fasternet_forward.1} parent=55 // pred_region
        %p1060 = scmp.lt.s32.totalorder %s19, 1
        %s1061 = scalar_select %p1060, %s19, 1
        %s1062 = smul.addr %s1061, 4
        %s1063 = smul.addr %s1062, 8
        %s1064 = scalar_lea.vmem %s7, %s1063
      $region60: #{fasternet_forward.1} parent=55 // pred_fallthru
        _
    $region56: #{fasternet_forward.1} parent=5 // pred_fallthru
      _
  $region6: #{fasternet_forward.1} parent=0 // loop_footer
    %s17 = sadd.s32 1, %s13
  $region7: #{fasternet_forward.1} parent=0 // loop_footer_branch
    %12 = sbr.rel target = $region3
  $region8: #{fasternet_forward.1} parent=0 // loop_exit
    _

</llo_original>
